<compile_context>
chip_gen: v5e
topology: v5e:2x2
jax: 0.10.0
libtpu: 0.0.40
codegen_flags: <defaults>
</compile_context>

<pallas_src>
import functools

import jax
import jax.numpy as jnp
from jax.experimental import pallas as pl
from jax.experimental.pallas import tpu as pltpu

HIDDEN = 256
LANE = 128


def _round_up(x, m):
    return (x + m - 1) // m * m


def _dual_tensorcore():
    """Best-effort detection of chips with 2 TensorCores (v4/v5p megacore, v7x)."""
    try:
        kind = jax.devices()[0].device_kind.lower()
    except Exception:
        return False
    return any(tag in kind for tag in ("v4", "v5p", "v7"))


def _tile_policy(B, tile_b, dual_tc):
    """Pick (rows per grid step, padded batch).

    Guarantees >= 2 grid steps on dual-TC chips once B >= 16 (so the
    "parallel" axis shards across both cores) and bounds padding waste to the
    8-sublane minimum per step instead of rounding B up to a full tile."""
    min_steps = 2 if (dual_tc and B >= 16) else 1
    n_steps = max(min_steps, pl.cdiv(B, tile_b))
    tb = min(tile_b, _round_up(pl.cdiv(B, n_steps), 8))
    n_steps = pl.cdiv(B, tb)
    return tb, n_steps * tb


def _actor_kernel(s_ref, w1_ref, b1_ref, w2_ref, b2_ref, w3_ref, b3_ref,
                  o_ref, *, max_action):
    # Layer 1: (TB, S) @ (S, H).  bf16 MXU operands, f32 accumulation; the
    # bias-add + ReLU epilogue runs in bf16 (VALU is the binding slot here,
    # the MXU has slack).
    x = s_ref[...].astype(jnp.bfloat16)
    h = jnp.dot(x, w1_ref[...], preferred_element_type=jnp.float32)
    h = jnp.maximum(h.astype(jnp.bfloat16) + b1_ref[...], 0)

    # Layer 2: (TB, H) @ (H, H), same bf16 epilogue.
    h = jnp.dot(h, w2_ref[...], preferred_element_type=jnp.float32)
    h = jnp.maximum(h.astype(jnp.bfloat16) + b2_ref[...], 0)

    # Layer 3 (lane-padded to a multiple of 128): f32 epilogue, tanh on EUP.
    h = jnp.dot(h, w3_ref[...], preferred_element_type=jnp.float32)
    o_ref[...] = (max_action * jnp.tanh(h + b3_ref[...])).astype(o_ref.dtype)


@functools.partial(jax.jit,
                   static_argnames=("action_dim", "max_action", "tile_b"))
def actor_forward(state, params, action_dim, max_action, tile_b=512):
    """state: (B, state_dim) float32.  Returns (B, action_dim) float32.

    `params` comes from init_actor_params (layer-3 weight/bias pre-padded)."""
    w1, b1, w2, b2, w3p, b3p = params
    B, S = state.shape
    H = w1.shape[1]
    A_pad = w3p.shape[1]

    tb, B_pad = _tile_policy(B, tile_b, _dual_tensorcore())
    if B_pad != B:
        state = jnp.pad(state, ((0, B_pad - B), (0, 0)))
    grid = (B_pad // tb,)

    kernel = functools.partial(_actor_kernel, max_action=float(max_action))

    inputs = (state, w1, b1, w2, b2, w3p, b3p)
    bytes_accessed = (sum(a.size * a.dtype.itemsize for a in inputs)
                      + B_pad * A_pad * 4)
    cost = pl.CostEstimate(
        flops=2 * B_pad * (S * H + H * H + H * A_pad),
        transcendentals=B_pad * A_pad,
        bytes_accessed=bytes_accessed,
    )

    out = pl.pallas_call(
        kernel,
        out_shape=jax.ShapeDtypeStruct((B_pad, A_pad), jnp.float32),
        grid=grid,
        in_specs=[
            pl.BlockSpec((tb, S), lambda i: (i, 0)),      # state: tiled over batch
            pl.BlockSpec((S, H), lambda i: (0, 0)),       # w1: resident in VMEM
            pl.BlockSpec((1, H), lambda i: (0, 0)),       # b1: resident
            pl.BlockSpec((H, H), lambda i: (0, 0)),       # w2: resident
            pl.BlockSpec((1, H), lambda i: (0, 0)),       # b2: resident
            pl.BlockSpec((H, A_pad), lambda i: (0, 0)),   # w3 (padded): resident
            pl.BlockSpec((1, A_pad), lambda i: (0, 0)),   # b3 (padded): resident
        ],
        out_specs=pl.BlockSpec((tb, A_pad), lambda i: (i, 0)),
        compiler_params=pltpu.CompilerParams(
            dimension_semantics=("parallel",),
        ),
        cost_estimate=cost,
    )(*inputs)
    return out[:B, :action_dim]


def init_actor_params(key, state_dim, action_dim, hidden=HIDDEN):
    """Deterministic init matching torch.nn.Linear's U(-1/sqrt(fan_in), ..) scheme.

    Weights stored as (in, out).  l1/l2 weights and biases in bf16; l3 weight in
    bf16 and bias in f32, both pre-padded on the lane axis to a multiple of 128
    (done once here so the per-call path does no padding work)."""
    k1, k2, k3, k4, k5, k6 = jax.random.split(key, 6)

    def uinit(k, fan_in, shape):
        bound = 1.0 / jnp.sqrt(jnp.float32(fan_in))
        return jax.random.uniform(k, shape, jnp.float32, -bound, bound)

    a_pad = _round_up(action_dim, LANE)
    w1 = uinit(k1, state_dim, (state_dim, hidden)).astype(jnp.bfloat16)
    b1 = uinit(k2, state_dim, (1, hidden)).astype(jnp.bfloat16)
    w2 = uinit(k3, hidden, (hidden, hidden)).astype(jnp.bfloat16)
    b2 = uinit(k4, hidden, (1, hidden)).astype(jnp.bfloat16)
    w3 = uinit(k5, hidden, (hidden, action_dim)).astype(jnp.bfloat16)
    b3 = uinit(k6, hidden, (1, action_dim))
    w3p = jnp.zeros((hidden, a_pad), jnp.bfloat16).at[:, :action_dim].set(w3)
    b3p = jnp.zeros((1, a_pad), jnp.float32).at[:, :action_dim].set(b3)
    return (w1, b1, w2, b2, w3p, b3p)


def actor_reference(state, params, action_dim, max_action):
    """Plain-JAX f32 reference using the same (bf16-stored) parameters."""
    w1, b1, w2, b2, w3p, b3p = params
    a = jax.nn.relu(state @ w1.astype(jnp.float32) + b1.astype(jnp.float32))
    a = jax.nn.relu(a @ w2.astype(jnp.float32) + b2.astype(jnp.float32))
    out = max_action * jnp.tanh(a @ w3p.astype(jnp.float32) + b3p)
    return out[:, :action_dim]


if __name__ == "__main__":
    state_dim = 16
    action_dim = 8
    max_action = 1.0

    key = jax.random.PRNGKey(0)
    k_params, k_s1, k_s2 = jax.random.split(key, 3)
    params = init_actor_params(k_params, state_dim, action_dim, hidden=HIDDEN)

    # Small batch (typical single-step actor call).
    state_small = jax.random.normal(k_s1, (2, state_dim), jnp.float32)
    out_small = jax.block_until_ready(
        actor_forward(state_small, params, action_dim=action_dim,
                      max_action=max_action))
    ref_small = actor_reference(state_small, params, action_dim, max_action)
    assert out_small.shape == (2, action_dim)
    assert jnp.allclose(out_small, ref_small, atol=3e-2, rtol=3e-2), \
        "mismatch vs reference (small batch)"

    # Odd-sized larger batch: exercises the adaptive tile (bounded padding) and
    # the multi-step parallel grid with resident weights.
    state_big = jax.random.normal(k_s2, (300, state_dim), jnp.float32)
    out_big = jax.block_until_ready(
        actor_forward(state_big, params, action_dim=action_dim,
                      max_action=max_action))
    ref_big = actor_reference(state_big, params, action_dim, max_action)
    assert out_big.shape == (300, action_dim)
    assert jnp.allclose(out_big, ref_big, atol=3e-2, rtol=3e-2), \
        "mismatch vs reference (big batch)"

    print("KERNEL_OK")
</pallas_src>

<mosaic_0001>
module attributes {stable_mosaic.version = 11 : i64} {
  func.func @_actor_kernel(%arg0: i32, %arg1: memref<8x16xf32, #tpu.memory_space<vmem>>, %arg2: memref<16x256xbf16, #tpu.memory_space<vmem>>, %arg3: memref<1x256xbf16, #tpu.memory_space<vmem>>, %arg4: memref<256x256xbf16, #tpu.memory_space<vmem>>, %arg5: memref<1x256xbf16, #tpu.memory_space<vmem>>, %arg6: memref<256x128xbf16, #tpu.memory_space<vmem>>, %arg7: memref<1x128xf32, #tpu.memory_space<vmem>>, %arg8: memref<8x128xf32, #tpu.memory_space<vmem>>) attributes {dimension_semantics = [#tpu.dimension_semantics<parallel>], iteration_bounds = array<i64: 1>, scalar_prefetch = 0 : i64, scratch_operands = 0 : i64, tpu.core_type = #tpu.core_type<tc>, window_params = [{transform_indices = @transform_0, window_bounds = array<i64: 8, 16>}, {pipeline_mode = #tpu.pipeline_mode<synchronous>, transform_indices = @transform_1, window_bounds = array<i64: 16, 256>}, {pipeline_mode = #tpu.pipeline_mode<synchronous>, transform_indices = @transform_2, window_bounds = array<i64: 1, 256>}, {pipeline_mode = #tpu.pipeline_mode<synchronous>, transform_indices = @transform_3, window_bounds = array<i64: 256, 256>}, {pipeline_mode = #tpu.pipeline_mode<synchronous>, transform_indices = @transform_4, window_bounds = array<i64: 1, 256>}, {pipeline_mode = #tpu.pipeline_mode<synchronous>, transform_indices = @transform_5, window_bounds = array<i64: 256, 128>}, {pipeline_mode = #tpu.pipeline_mode<synchronous>, transform_indices = @transform_6, window_bounds = array<i64: 1, 128>}, {transform_indices = @transform_7, window_bounds = array<i64: 8, 128>}]} {
    %c0 = arith.constant 0 : index
    %c0_0 = arith.constant 0 : index
    %0 = vector.load %arg1[%c0, %c0_0] : memref<8x16xf32, #tpu.memory_space<vmem>>, vector<8x16xf32>
    %1 = arith.truncf %0 : vector<8x16xf32> to vector<8x16xbf16>
    %c0_1 = arith.constant 0 : index
    %c0_2 = arith.constant 0 : index
    %2 = vector.load %arg2[%c0_1, %c0_2] : memref<16x256xbf16, #tpu.memory_space<vmem>>, vector<16x256xbf16>
    %cst = arith.constant dense<0.000000e+00> : vector<8x256xf32>
    %3 = tpu.matmul %1, %2, %cst {dimension_numbers = #tpu.dot_dimension_numbers<[1], [0], [0], [1], [0, 0, 1, 1], [], []>} : vector<8x16xbf16>, vector<16x256xbf16>, vector<8x256xf32> -> vector<8x256xf32>
    %4 = arith.truncf %3 : vector<8x256xf32> to vector<8x256xbf16>
    %c0_3 = arith.constant 0 : index
    %c0_4 = arith.constant 0 : index
    %5 = vector.load %arg3[%c0_3, %c0_4] : memref<1x256xbf16, #tpu.memory_space<vmem>>, vector<1x256xbf16>
    %6 = vector.broadcast %5 : vector<1x256xbf16> to vector<8x256xbf16>
    %7 = arith.addf %4, %6 : vector<8x256xbf16>
    %cst_5 = arith.constant 0.000000e+00 : bf16
    %8 = vector.broadcast %cst_5 : bf16 to vector<8x256xbf16>
    %9 = arith.maximumf %7, %8 : vector<8x256xbf16>
    %c0_6 = arith.constant 0 : index
    %c0_7 = arith.constant 0 : index
    %10 = vector.load %arg4[%c0_6, %c0_7] : memref<256x256xbf16, #tpu.memory_space<vmem>>, vector<256x256xbf16>
    %cst_8 = arith.constant dense<0.000000e+00> : vector<8x256xf32>
    %11 = tpu.matmul %9, %10, %cst_8 {dimension_numbers = #tpu.dot_dimension_numbers<[1], [0], [0], [1], [0, 0, 1, 1], [], []>} : vector<8x256xbf16>, vector<256x256xbf16>, vector<8x256xf32> -> vector<8x256xf32>
    %12 = arith.truncf %11 : vector<8x256xf32> to vector<8x256xbf16>
    %c0_9 = arith.constant 0 : index
    %c0_10 = arith.constant 0 : index
    %13 = vector.load %arg5[%c0_9, %c0_10] : memref<1x256xbf16, #tpu.memory_space<vmem>>, vector<1x256xbf16>
    %14 = vector.broadcast %13 : vector<1x256xbf16> to vector<8x256xbf16>
    %15 = arith.addf %12, %14 : vector<8x256xbf16>
    %cst_11 = arith.constant 0.000000e+00 : bf16
    %16 = vector.broadcast %cst_11 : bf16 to vector<8x256xbf16>
    %17 = arith.maximumf %15, %16 : vector<8x256xbf16>
    %c0_12 = arith.constant 0 : index
    %c0_13 = arith.constant 0 : index
    %18 = vector.load %arg6[%c0_12, %c0_13] : memref<256x128xbf16, #tpu.memory_space<vmem>>, vector<256x128xbf16>
    %cst_14 = arith.constant dense<0.000000e+00> : vector<8x128xf32>
    %19 = tpu.matmul %17, %18, %cst_14 {dimension_numbers = #tpu.dot_dimension_numbers<[1], [0], [0], [1], [0, 0, 1, 1], [], []>} : vector<8x256xbf16>, vector<256x128xbf16>, vector<8x128xf32> -> vector<8x128xf32>
    %c0_15 = arith.constant 0 : index
    %c0_16 = arith.constant 0 : index
    %20 = vector.load %arg7[%c0_15, %c0_16] : memref<1x128xf32, #tpu.memory_space<vmem>>, vector<1x128xf32>
    %21 = vector.broadcast %20 : vector<1x128xf32> to vector<8x128xf32>
    %22 = arith.addf %19, %21 : vector<8x128xf32>
    %23 = math.tanh %22 : vector<8x128xf32>
    %cst_17 = arith.constant 1.000000e+00 : f32
    %24 = vector.broadcast %cst_17 : f32 to vector<8x128xf32>
    %25 = arith.mulf %24, %23 : vector<8x128xf32>
    %c0_18 = arith.constant 0 : index
    %c0_19 = arith.constant 0 : index
    %26 = vector.load %arg8[%c0_18, %c0_19] : memref<8x128xf32, #tpu.memory_space<vmem>>, vector<8x128xf32>
    tpu.vector_store %arg8[%c0_18, %c0_19], %25 {strides = array<i32>} : memref<8x128xf32, #tpu.memory_space<vmem>>, vector<8x128xf32>,
    return
  }
  func.func @transform_0(%arg0: i32) -> (i32, i32) {
    %c0_i32 = arith.constant 0 : i32
    %c0_i32_0 = arith.constant 0 : i32
    return %arg0, %c0_i32 : i32, i32
  }
  func.func @transform_1(%arg0: i32) -> (i32, i32) {
    %c0_i32 = arith.constant 0 : i32
    %c0_i32_0 = arith.constant 0 : i32
    %c0_i32_1 = arith.constant 0 : i32
    return %c0_i32, %c0_i32_0 : i32, i32
  }
  func.func @transform_2(%arg0: i32) -> (i32, i32) {
    %c0_i32 = arith.constant 0 : i32
    %c0_i32_0 = arith.constant 0 : i32
    %c0_i32_1 = arith.constant 0 : i32
    return %c0_i32, %c0_i32_0 : i32, i32
  }
  func.func @transform_3(%arg0: i32) -> (i32, i32) {
    %c0_i32 = arith.constant 0 : i32
    %c0_i32_0 = arith.constant 0 : i32
    %c0_i32_1 = arith.constant 0 : i32
    return %c0_i32, %c0_i32_0 : i32, i32
  }
  func.func @transform_4(%arg0: i32) -> (i32, i32) {
    %c0_i32 = arith.constant 0 : i32
    %c0_i32_0 = arith.constant 0 : i32
    %c0_i32_1 = arith.constant 0 : i32
    return %c0_i32, %c0_i32_0 : i32, i32
  }
  func.func @transform_5(%arg0: i32) -> (i32, i32) {
    %c0_i32 = arith.constant 0 : i32
    %c0_i32_0 = arith.constant 0 : i32
    %c0_i32_1 = arith.constant 0 : i32
    return %c0_i32, %c0_i32_0 : i32, i32
  }
  func.func @transform_6(%arg0: i32) -> (i32, i32) {
    %c0_i32 = arith.constant 0 : i32
    %c0_i32_0 = arith.constant 0 : i32
    %c0_i32_1 = arith.constant 0 : i32
    return %c0_i32, %c0_i32_0 : i32, i32
  }
  func.func @transform_7(%arg0: i32) -> (i32, i32) {
    %c0_i32 = arith.constant 0 : i32
    %c0_i32_0 = arith.constant 0 : i32
    return %arg0, %c0_i32 : i32, i32
  }
}

</mosaic_0001>

<llo_original>
// kernel: actor_forward.1
$region0: #{actor_forward.1}
  #allocation0 [shape = 'u32[]', space=smem, size = 0x4, offset = 0x4, fixed_abs, tag = 'smem constant byte address 0x4 - core index']
  #allocation1 [shape = 'u32[72,128]{1,0:T(1,128)}', space=vmem, size = 0x9000, scoped, tag = 'internal scratch']
  %s0 = inlined_call_operand.vmem [shape: f32[8,16], index: 0, kind: input, shape index: {}]
  %s1 = inlined_call_operand.hbm [shape: bf16[16,256], index: 1, kind: input, shape index: {}]
  %s2 = inlined_call_operand.vmem [shape: bf16[1,256], index: 2, kind: input, shape index: {}]
  %s3 = inlined_call_operand.hbm [shape: bf16[256,256], index: 3, kind: input, shape index: {}]
  %s4 = inlined_call_operand.vmem [shape: bf16[1,256], index: 4, kind: input, shape index: {}]
  %s5 = inlined_call_operand.hbm [shape: bf16[256,128], index: 5, kind: input, shape index: {}]
  %s6 = inlined_call_operand.vmem [shape: f32[1,128], index: 6, kind: input, shape index: {}]
  %s7 = inlined_call_operand.vmem [shape: f32[8,128], index: 7, kind: output, shape index: {}]
  %s8 = sld [smem:[#allocation0]]
  $region50: #{actor_forward.1} parent=0
    _
  %s10 = ssub.s32 1, %s8
  %s11 = scalar_select 0, %s10, %s8
  $region1: #{actor_forward.1} parent=0
    #allocation2 [shape = 'u8[8192]{0}', space=vmem, size = 0x2000, scoped, tag = 'input window, operand 1, single buffered']
    #allocation3 [shape = 's32[1]{0}', space=sflag, size = 0x4, scoped, tag = 'scoped memory for actor_forward.1']
    #allocation4 [shape = 'u8[131072]{0}', space=vmem, size = 0x20000, scoped, tag = 'input window, operand 3, single buffered']
    #allocation5 [shape = 's32[1]{0}', space=sflag, size = 0x4, scoped, tag = 'scoped memory for actor_forward.1']
    #allocation6 [shape = 'u8[65536]{0}', space=vmem, size = 0x10000, scoped, tag = 'input window, operand 5, single buffered']
    %12 = vsyncpa [#allocation3], 0
    %13 = vsyncpa [#allocation5], 0
    // Predicated region
    $region2: #{actor_forward.1} parent=1 // pred_check
      _
    $region3: #{actor_forward.1} parent=1 // pred_check_branch
      %15 = sbr.rel (0) target = $region5
    $region4: #{actor_forward.1} parent=1 // pred_region
      _
    $region5: #{actor_forward.1} parent=1 // pred_fallthru
      _
    // Predicated region
    $region6: #{actor_forward.1} parent=1 // pred_check
      _
    $region7: #{actor_forward.1} parent=1 // pred_check_branch
      %17 = sbr.rel (0) target = $region9
    $region8: #{actor_forward.1} parent=1 // pred_region
      %19 = vsyncadd [#allocation3], 0
      %s20 = sshll.u32 %s1, 4
      %s21 = int_to_ptr.hbm [resolvable:$true] %s20
      %s22 = sshll.u32 [#allocation2], 4
      %s23 = int_to_ptr.vmem [resolvable:$true] %s22
      %28 = dma.hbm_to_vmem [thread:$0]  %s21, 256, %s23, [#allocation3], 128, 128, 8
    $region9: #{actor_forward.1} parent=1 // pred_fallthru
      _
    // Predicated region
    $region10: #{actor_forward.1} parent=1 // pred_check
      _
    $region11: #{actor_forward.1} parent=1 // pred_check_branch
      %30 = sbr.rel (0) target = $region13
    $region12: #{actor_forward.1} parent=1 // pred_region
      _
    $region13: #{actor_forward.1} parent=1 // pred_fallthru
      _
    // Predicated region
    $region14: #{actor_forward.1} parent=1 // pred_check
      _
    $region15: #{actor_forward.1} parent=1 // pred_check_branch
      %32 = sbr.rel (0) target = $region17
    $region16: #{actor_forward.1} parent=1 // pred_region
      %34 = vsyncadd [#allocation5], 0
      %s35 = sshll.u32 %s3, 4
      %s36 = int_to_ptr.hbm [resolvable:$true] %s35
      %s37 = sshll.u32 [#allocation4], 4
      %s38 = int_to_ptr.vmem [resolvable:$true] %s37
      %43 = dma.hbm_to_vmem [thread:$0]  %s36, 4096, %s38, [#allocation5], 128, 128, 8
    $region17: #{actor_forward.1} parent=1 // pred_fallthru
      _
    // Predicated region
    $region18: #{actor_forward.1} parent=1 // pred_check
      _
    $region19: #{actor_forward.1} parent=1 // pred_check_branch
      %45 = sbr.rel (0) target = $region21
    $region20: #{actor_forward.1} parent=1 // pred_region
      _
    $region21: #{actor_forward.1} parent=1 // pred_fallthru
      _
    // Predicated region
    $region22: #{actor_forward.1} parent=1 // pred_check
      _
    $region23: #{actor_forward.1} parent=1 // pred_check_branch
      %47 = sbr.rel (0) target = $region25
    $region24: #{actor_forward.1} parent=1 // pred_region
      %49 = vsyncadd [#allocation5], 0
      %s50 = sshll.u32 %s5, 4
      %s51 = int_to_ptr.hbm [resolvable:$true] %s50
      %s52 = sshll.u32 [#allocation6], 4
      %s53 = int_to_ptr.vmem [resolvable:$true] %s52
      %58 = dma.hbm_to_vmem [thread:$0]  %s51, 2048, %s53, [#allocation5], 64, 64, 4
    $region25: #{actor_forward.1} parent=1 // pred_fallthru
      _
    // Predicated region
    $region26: #{actor_forward.1} parent=1 // pred_check
      _
    $region27: #{actor_forward.1} parent=1 // pred_check_branch
      %60 = sbr.rel (0) target = $region29
    $region28: #{actor_forward.1} parent=1 // pred_region
      _
    $region29: #{actor_forward.1} parent=1 // pred_fallthru
      _
    // Predicated region
    $region30: #{actor_forward.1} parent=1 // pred_check
      _
    $region31: #{actor_forward.1} parent=1 // pred_check_branch
      %62 = sbr.rel (0) target = $region33
    $region32: #{actor_forward.1} parent=1 // pred_region
      %64 = dma.done [#allocation3], 256
    $region33: #{actor_forward.1} parent=1 // pred_fallthru
      _
    // Predicated region
    $region34: #{actor_forward.1} parent=1 // pred_check
      _
    $region35: #{actor_forward.1} parent=1 // pred_check_branch
      %66 = sbr.rel (0) target = $region37
    $region36: #{actor_forward.1} parent=1 // pred_region
      %68 = dma.done [#allocation5], 4096
    $region37: #{actor_forward.1} parent=1 // pred_fallthru
      _
    // Predicated region
    $region38: #{actor_forward.1} parent=1 // pred_check
      _
    $region39: #{actor_forward.1} parent=1 // pred_check_branch
      %70 = sbr.rel (0) target = $region41
    $region40: #{actor_forward.1} parent=1 // pred_region
      %72 = dma.done [#allocation5], 2048
    $region41: #{actor_forward.1} parent=1 // pred_fallthru
      _
    %v74 = vld [vmem:[%s0] sm:$0xff]
    %v75 = vpack.c.bf16 %v74, %v74
    %v76 = vld [vmem:[#allocation2] sm:$0xff]
    %v77 = vld [vmem:[#allocation2 + $0x8] sm:$0xff]
    %v80 = vunpack.c.l.b16 %v76
    %v81 = vunpack.c.h.b16 %v76
    %v82 = vunpack.c.l.b16 %v77
    %v83 = vunpack.c.h.b16 %v77
    %v84 = vpack.c.b16 %v82, %v80
    %v85 = vpack.c.b16 %v83, %v81
    %vm88 = vcmask 130048
    %v90 = vsel %vm88, %v75, 0
    %92 = vmatpush.bf16.msra.mxu0 0
    %93 = vmatpush.bf16.msra.mxu0 0
    %94 = vmatpush.bf16.msra.mxu0 0
    %95 = vmatpush.bf16.msra.mxu0 0
    %96 = vmatpush.bf16.msra.mxu0 0
    %97 = vmatpush.bf16.msra.mxu0 0
    %98 = vmatpush.bf16.msra.mxu0 0
    %99 = vmatpush.bf16.msra.mxu0 %v84
    %100 = vmatmul.bf16.gmra.mxu0 %v90
    %v101 = vpop.f32.mrf.mxu0
    %v102 = vadd.f32 0.0, %v101
    %v103 = vpop.f32.mrf.mxu0
    %104 = vdwg.mxu0
    %105 = vmatpush.bf16.msra.mxu0 0
    %106 = vmatpush.bf16.msra.mxu0 0
    %107 = vmatpush.bf16.msra.mxu0 0
    %108 = vmatpush.bf16.msra.mxu0 0
    %109 = vmatpush.bf16.msra.mxu0 0
    %110 = vmatpush.bf16.msra.mxu0 0
    %111 = vmatpush.bf16.msra.mxu0 0
    %112 = vmatpush.bf16.msra.mxu0 %v85
    %113 = vmatmul.bf16.gmra.mxu0 %v90
    %v114 = vpop.f32.mrf.mxu0
    %v115 = vadd.f32 0.0, %v114
    %v116 = vpop.f32.mrf.mxu0
    %117 = vdwg.mxu0
    %v118 = vpack.c.bf16 %v115, %v102
    %v119 = vld [vmem:[%s2] sm:$0x3]
    %121 = vst [vmem:[#allocation1] ss:$9 sm:$0xff] %v119
    %v122 = vld [vmem:[#allocation1] sm:$0xff]
    %v123 = vld [vmem:[#allocation1 + $0x9] sm:$0xff]
    %v124 = vpack.i.b16 %v122, %v122
    %v126 = vperm.slane %v124, 0
    %v127 = vpack.i.b16 %v123, %v123
    %v129 = vperm.slane %v127, 0
    %v130 = vunpack.c.l.bf16 %v118
    %v131 = vunpack.c.h.bf16 %v118
    %v132 = vunpack.c.l.bf16 %v126
    %v133 = vunpack.c.l.bf16 %v129
    %v134 = vadd.f32 %v130, %v132
    %v135 = vadd.f32 %v131, %v133
    %v136 = vpack.c.bf16 %v135, %v134
    %v137 = vunpack.c.l.bf16 %v136
    %v138 = vunpack.c.h.bf16 %v136
    %v139 = vmax.f32 %v137, 0.0
    %v140 = vmax.f32 %v138, 0.0
    %v141 = vpack.c.bf16 %v139, %v139
    %v142 = vpack.c.bf16 %v140, %v140
    %v143 = vld [vmem:[#allocation4] sm:$0xff]
    %v144 = vld [vmem:[#allocation4 + $0x8] sm:$0xff]
    %v145 = vld [vmem:[#allocation4 + $0x10] sm:$0xff]
    %v146 = vld [vmem:[#allocation4 + $0x18] sm:$0xff]
    %v147 = vld [vmem:[#allocation4 + $0x20] sm:$0xff]
    %v148 = vld [vmem:[#allocation4 + $0x28] sm:$0xff]
    %v149 = vld [vmem:[#allocation4 + $0x30] sm:$0xff]
    %v150 = vld [vmem:[#allocation4 + $0x38] sm:$0xff]
    %v151 = vld [vmem:[#allocation4 + $0x40] sm:$0xff]
    %v152 = vld [vmem:[#allocation4 + $0x48] sm:$0xff]
    %v153 = vld [vmem:[#allocation4 + $0x50] sm:$0xff]
    %v154 = vld [vmem:[#allocation4 + $0x58] sm:$0xff]
    %v155 = vld [vmem:[#allocation4 + $0x60] sm:$0xff]
    %v156 = vld [vmem:[#allocation4 + $0x68] sm:$0xff]
    %v157 = vld [vmem:[#allocation4 + $0x70] sm:$0xff]
    %v158 = vld [vmem:[#allocation4 + $0x78] sm:$0xff]
    %v159 = vld [vmem:[#allocation4 + $0x80] sm:$0xff]
    %v160 = vld [vmem:[#allocation4 + $0x88] sm:$0xff]
    %v161 = vld [vmem:[#allocation4 + $0x90] sm:$0xff]
    %v162 = vld [vmem:[#allocation4 + $0x98] sm:$0xff]
    %v163 = vld [vmem:[#allocation4 + $0xa0] sm:$0xff]
    %v164 = vld [vmem:[#allocation4 + $0xa8] sm:$0xff]
    %v165 = vld [vmem:[#allocation4 + $0xb0] sm:$0xff]
    %v166 = vld [vmem:[#allocation4 + $0xb8] sm:$0xff]
    %v167 = vld [vmem:[#allocation4 + $0xc0] sm:$0xff]
    %v168 = vld [vmem:[#allocation4 + $0xc8] sm:$0xff]
    %v169 = vld [vmem:[#allocation4 + $0xd0] sm:$0xff]
    %v170 = vld [vmem:[#allocation4 + $0xd8] sm:$0xff]
    %v171 = vld [vmem:[#allocation4 + $0xe0] sm:$0xff]
    %v172 = vld [vmem:[#allocation4 + $0xe8] sm:$0xff]
    %v173 = vld [vmem:[#allocation4 + $0xf0] sm:$0xff]
    %v174 = vld [vmem:[#allocation4 + $0xf8] sm:$0xff]
    %v207 = vunpack.c.l.b16 %v143
    %v208 = vunpack.c.h.b16 %v143
    %v209 = vunpack.c.l.b16 %v144
    %v210 = vunpack.c.h.b16 %v144
    %v211 = vunpack.c.l.b16 %v145
    %v212 = vunpack.c.h.b16 %v145
    %v213 = vunpack.c.l.b16 %v146
    %v214 = vunpack.c.h.b16 %v146
    %v215 = vunpack.c.l.b16 %v147
    %v216 = vunpack.c.h.b16 %v147
    %v217 = vunpack.c.l.b16 %v148
    %v218 = vunpack.c.h.b16 %v148
    %v219 = vunpack.c.l.b16 %v149
    %v220 = vunpack.c.h.b16 %v149
    %v221 = vunpack.c.l.b16 %v150
    %v222 = vunpack.c.h.b16 %v150
    %v223 = vunpack.c.l.b16 %v151
    %v224 = vunpack.c.h.b16 %v151
    %v225 = vunpack.c.l.b16 %v152
    %v226 = vunpack.c.h.b16 %v152
    %v227 = vunpack.c.l.b16 %v153
    %v228 = vunpack.c.h.b16 %v153
    %v229 = vunpack.c.l.b16 %v154
    %v230 = vunpack.c.h.b16 %v154
    %v231 = vunpack.c.l.b16 %v155
    %v232 = vunpack.c.h.b16 %v155
    %v233 = vunpack.c.l.b16 %v156
    %v234 = vunpack.c.h.b16 %v156
    %v235 = vunpack.c.l.b16 %v157
    %v236 = vunpack.c.h.b16 %v157
    %v237 = vunpack.c.l.b16 %v158
    %v238 = vunpack.c.h.b16 %v158
    %v239 = vunpack.c.l.b16 %v159
    %v240 = vunpack.c.h.b16 %v159
    %v241 = vunpack.c.l.b16 %v160
    %v242 = vunpack.c.h.b16 %v160
    %v243 = vunpack.c.l.b16 %v161
    %v244 = vunpack.c.h.b16 %v161
    %v245 = vunpack.c.l.b16 %v162
    %v246 = vunpack.c.h.b16 %v162
    %v247 = vunpack.c.l.b16 %v163
    %v248 = vunpack.c.h.b16 %v163
    %v249 = vunpack.c.l.b16 %v164
    %v250 = vunpack.c.h.b16 %v164
    %v251 = vunpack.c.l.b16 %v165
    %v252 = vunpack.c.h.b16 %v165
    %v253 = vunpack.c.l.b16 %v166
    %v254 = vunpack.c.h.b16 %v166
    %v255 = vunpack.c.l.b16 %v167
    %v256 = vunpack.c.h.b16 %v167
    %v257 = vunpack.c.l.b16 %v168
    %v258 = vunpack.c.h.b16 %v168
    %v259 = vunpack.c.l.b16 %v169
    %v260 = vunpack.c.h.b16 %v169
    %v261 = vunpack.c.l.b16 %v170
    %v262 = vunpack.c.h.b16 %v170
    %v263 = vunpack.c.l.b16 %v171
    %v264 = vunpack.c.h.b16 %v171
    %v265 = vunpack.c.l.b16 %v172
    %v266 = vunpack.c.h.b16 %v172
    %v267 = vunpack.c.l.b16 %v173
    %v268 = vunpack.c.h.b16 %v173
    %v269 = vunpack.c.l.b16 %v174
    %v270 = vunpack.c.h.b16 %v174
    %v271 = vpack.c.b16 %v209, %v207
    %v272 = vpack.c.b16 %v210, %v208
    %v273 = vpack.c.b16 %v213, %v211
    %v274 = vpack.c.b16 %v214, %v212
    %v275 = vpack.c.b16 %v217, %v215
    %v276 = vpack.c.b16 %v218, %v216
    %v277 = vpack.c.b16 %v221, %v219
    %v278 = vpack.c.b16 %v222, %v220
    %v279 = vpack.c.b16 %v225, %v223
    %v280 = vpack.c.b16 %v226, %v224
    %v281 = vpack.c.b16 %v229, %v227
    %v282 = vpack.c.b16 %v230, %v228
    %v283 = vpack.c.b16 %v233, %v231
    %v284 = vpack.c.b16 %v234, %v232
    %v285 = vpack.c.b16 %v237, %v235
    %v286 = vpack.c.b16 %v238, %v236
    %v287 = vpack.c.b16 %v241, %v239
    %v288 = vpack.c.b16 %v242, %v240
    %v289 = vpack.c.b16 %v245, %v243
    %v290 = vpack.c.b16 %v246, %v244
    %v291 = vpack.c.b16 %v249, %v247
    %v292 = vpack.c.b16 %v250, %v248
    %v293 = vpack.c.b16 %v253, %v251
    %v294 = vpack.c.b16 %v254, %v252
    %v295 = vpack.c.b16 %v257, %v255
    %v296 = vpack.c.b16 %v258, %v256
    %v297 = vpack.c.b16 %v261, %v259
    %v298 = vpack.c.b16 %v262, %v260
    %v299 = vpack.c.b16 %v265, %v263
    %v300 = vpack.c.b16 %v266, %v264
    %v301 = vpack.c.b16 %v269, %v267
    %v302 = vpack.c.b16 %v270, %v268
    %335 = vmatpush.bf16.msra.mxu0 %v285
    %336 = vmatpush.bf16.msra.mxu0 %v283
    %337 = vmatpush.bf16.msra.mxu0 %v281
    %338 = vmatpush.bf16.msra.mxu0 %v279
    %339 = vmatpush.bf16.msra.mxu0 %v277
    %340 = vmatpush.bf16.msra.mxu0 %v275
    %341 = vmatpush.bf16.msra.mxu0 %v273
    %342 = vmatpush.bf16.msra.mxu0 %v271
    %343 = vmatmul.bf16.gmra.mxu0 %v141
    %v344 = vpop.f32.mrf.mxu0
    %v345 = vadd.f32 0.0, %v344
    %v346 = vpop.f32.mrf.mxu0
    %347 = vdwg.mxu0
    %348 = vmatpush.bf16.msra.mxu0 %v301
    %349 = vmatpush.bf16.msra.mxu0 %v299
    %350 = vmatpush.bf16.msra.mxu0 %v297
    %351 = vmatpush.bf16.msra.mxu0 %v295
    %352 = vmatpush.bf16.msra.mxu0 %v293
    %353 = vmatpush.bf16.msra.mxu0 %v291
    %354 = vmatpush.bf16.msra.mxu0 %v289
    %355 = vmatpush.bf16.msra.mxu0 %v287
    %356 = vmatmul.bf16.gmra.mxu0 %v142
    %v357 = vpop.f32.mrf.mxu0
    %v358 = vadd.f32 %v345, %v357
    %v359 = vpop.f32.mrf.mxu0
    %360 = vdwg.mxu0
    %361 = vmatpush.bf16.msra.mxu0 %v286
    %362 = vmatpush.bf16.msra.mxu0 %v284
    %363 = vmatpush.bf16.msra.mxu0 %v282
    %364 = vmatpush.bf16.msra.mxu0 %v280
    %365 = vmatpush.bf16.msra.mxu0 %v278
    %366 = vmatpush.bf16.msra.mxu0 %v276
    %367 = vmatpush.bf16.msra.mxu0 %v274
    %368 = vmatpush.bf16.msra.mxu0 %v272
    %369 = vmatmul.bf16.gmra.mxu0 %v141
    %v370 = vpop.f32.mrf.mxu0
    %v371 = vadd.f32 0.0, %v370
    %v372 = vpop.f32.mrf.mxu0
    %373 = vdwg.mxu0
    %374 = vmatpush.bf16.msra.mxu0 %v302
    %375 = vmatpush.bf16.msra.mxu0 %v300
    %376 = vmatpush.bf16.msra.mxu0 %v298
    %377 = vmatpush.bf16.msra.mxu0 %v296
    %378 = vmatpush.bf16.msra.mxu0 %v294
    %379 = vmatpush.bf16.msra.mxu0 %v292
    %380 = vmatpush.bf16.msra.mxu0 %v290
    %381 = vmatpush.bf16.msra.mxu0 %v288
    %382 = vmatmul.bf16.gmra.mxu0 %v142
    %v383 = vpop.f32.mrf.mxu0
    %v384 = vadd.f32 %v371, %v383
    %v385 = vpop.f32.mrf.mxu0
    %386 = vdwg.mxu0
    %v387 = vpack.c.bf16 %v384, %v358
    %v388 = vld [vmem:[%s4] sm:$0x3]
    %390 = vst [vmem:[#allocation1] ss:$9 sm:$0xff] %v388
    %v391 = vld [vmem:[#allocation1] sm:$0xff]
    %v392 = vld [vmem:[#allocation1 + $0x9] sm:$0xff]
    %v393 = vpack.i.b16 %v391, %v391
    %v395 = vperm.slane %v393, 0
    %v396 = vpack.i.b16 %v392, %v392
    %v398 = vperm.slane %v396, 0
    %v399 = vunpack.c.l.bf16 %v387
    %v400 = vunpack.c.h.bf16 %v387
    %v401 = vunpack.c.l.bf16 %v395
    %v402 = vunpack.c.l.bf16 %v398
    %v403 = vadd.f32 %v399, %v401
    %v404 = vadd.f32 %v400, %v402
    %v405 = vpack.c.bf16 %v404, %v403
    %v406 = vunpack.c.l.bf16 %v405
    %v407 = vunpack.c.h.bf16 %v405
    %v408 = vmax.f32 %v406, 0.0
    %v409 = vmax.f32 %v407, 0.0
    %v410 = vpack.c.bf16 %v408, %v408
    %v411 = vpack.c.bf16 %v409, %v409
    %v412 = vld [vmem:[#allocation6] sm:$0xf]
    %v413 = vld [vmem:[#allocation6 + $0x4] sm:$0xf]
    %v414 = vld [vmem:[#allocation6 + $0x8] sm:$0xf]
    %v415 = vld [vmem:[#allocation6 + $0xc] sm:$0xf]
    %v416 = vld [vmem:[#allocation6 + $0x10] sm:$0xf]
    %v417 = vld [vmem:[#allocation6 + $0x14] sm:$0xf]
    %v418 = vld [vmem:[#allocation6 + $0x18] sm:$0xf]
    %v419 = vld [vmem:[#allocation6 + $0x1c] sm:$0xf]
    %v420 = vld [vmem:[#allocation6 + $0x20] sm:$0xf]
    %v421 = vld [vmem:[#allocation6 + $0x24] sm:$0xf]
    %v422 = vld [vmem:[#allocation6 + $0x28] sm:$0xf]
    %v423 = vld [vmem:[#allocation6 + $0x2c] sm:$0xf]
    %v424 = vld [vmem:[#allocation6 + $0x30] sm:$0xf]
    %v425 = vld [vmem:[#allocation6 + $0x34] sm:$0xf]
    %v426 = vld [vmem:[#allocation6 + $0x38] sm:$0xf]
    %v427 = vld [vmem:[#allocation6 + $0x3c] sm:$0xf]
    %v428 = vld [vmem:[#allocation6 + $0x40] sm:$0xf]
    %v429 = vld [vmem:[#allocation6 + $0x44] sm:$0xf]
    %v430 = vld [vmem:[#allocation6 + $0x48] sm:$0xf]
    %v431 = vld [vmem:[#allocation6 + $0x4c] sm:$0xf]
    %v432 = vld [vmem:[#allocation6 + $0x50] sm:$0xf]
    %v433 = vld [vmem:[#allocation6 + $0x54] sm:$0xf]
    %v434 = vld [vmem:[#allocation6 + $0x58] sm:$0xf]
    %v435 = vld [vmem:[#allocation6 + $0x5c] sm:$0xf]
    %v436 = vld [vmem:[#allocation6 + $0x60] sm:$0xf]
    %v437 = vld [vmem:[#allocation6 + $0x64] sm:$0xf]
    %v438 = vld [vmem:[#allocation6 + $0x68] sm:$0xf]
    %v439 = vld [vmem:[#allocation6 + $0x6c] sm:$0xf]
    %v440 = vld [vmem:[#allocation6 + $0x70] sm:$0xf]
    %v441 = vld [vmem:[#allocation6 + $0x74] sm:$0xf]
    %v442 = vld [vmem:[#allocation6 + $0x78] sm:$0xf]
    %v443 = vld [vmem:[#allocation6 + $0x7c] sm:$0xf]
    %v444 = vld [vmem:[%s6] sm:$0x1]
    %v446 = vperm.slane %v444, 0
    %v480 = vunpack.c.l.b16 %v412
    %v481 = vunpack.c.l.b16 %v413
    %v482 = vunpack.c.l.b16 %v414
    %v483 = vunpack.c.l.b16 %v415
    %v484 = vunpack.c.l.b16 %v416
    %v485 = vunpack.c.l.b16 %v417
    %v486 = vunpack.c.l.b16 %v418
    %v487 = vunpack.c.l.b16 %v419
    %v488 = vunpack.c.l.b16 %v420
    %v489 = vunpack.c.l.b16 %v421
    %v490 = vunpack.c.l.b16 %v422
    %v491 = vunpack.c.l.b16 %v423
    %v492 = vunpack.c.l.b16 %v424
    %v493 = vunpack.c.l.b16 %v425
    %v494 = vunpack.c.l.b16 %v426
    %v495 = vunpack.c.l.b16 %v427
    %v496 = vunpack.c.l.b16 %v428
    %v497 = vunpack.c.l.b16 %v429
    %v498 = vunpack.c.l.b16 %v430
    %v499 = vunpack.c.l.b16 %v431
    %v500 = vunpack.c.l.b16 %v432
    %v501 = vunpack.c.l.b16 %v433
    %v502 = vunpack.c.l.b16 %v434
    %v503 = vunpack.c.l.b16 %v435
    %v504 = vunpack.c.l.b16 %v436
    %v505 = vunpack.c.l.b16 %v437
    %v506 = vunpack.c.l.b16 %v438
    %v507 = vunpack.c.l.b16 %v439
    %v508 = vunpack.c.l.b16 %v440
    %v509 = vunpack.c.l.b16 %v441
    %v510 = vunpack.c.l.b16 %v442
    %v511 = vunpack.c.l.b16 %v443
    %v512 = vpack.c.b16 %v481, %v480
    %v513 = vpack.c.b16 %v483, %v482
    %v514 = vpack.c.b16 %v485, %v484
    %v515 = vpack.c.b16 %v487, %v486
    %v516 = vpack.c.b16 %v489, %v488
    %v517 = vpack.c.b16 %v491, %v490
    %v518 = vpack.c.b16 %v493, %v492
    %v519 = vpack.c.b16 %v495, %v494
    %v520 = vpack.c.b16 %v497, %v496
    %v521 = vpack.c.b16 %v499, %v498
    %v522 = vpack.c.b16 %v501, %v500
    %v523 = vpack.c.b16 %v503, %v502
    %v524 = vpack.c.b16 %v505, %v504
    %v525 = vpack.c.b16 %v507, %v506
    %v526 = vpack.c.b16 %v509, %v508
    %v527 = vpack.c.b16 %v511, %v510
    %544 = vmatpush.bf16.msra.mxu0 %v519
    %545 = vmatpush.bf16.msra.mxu0 %v518
    %546 = vmatpush.bf16.msra.mxu0 %v517
    %547 = vmatpush.bf16.msra.mxu0 %v516
    %548 = vmatpush.bf16.msra.mxu0 %v515
    %549 = vmatpush.bf16.msra.mxu0 %v514
    %550 = vmatpush.bf16.msra.mxu0 %v513
    %551 = vmatpush.bf16.msra.mxu0 %v512
    %552 = vmatmul.bf16.gmra.mxu0 %v410
    %v553 = vpop.f32.mrf.mxu0
    %v554 = vadd.f32 %v446, %v553
    %v555 = vpop.f32.mrf.mxu0
    %556 = vdwg.mxu0
    %557 = vmatpush.bf16.msra.mxu0 %v527
    %558 = vmatpush.bf16.msra.mxu0 %v526
    %559 = vmatpush.bf16.msra.mxu0 %v525
    %560 = vmatpush.bf16.msra.mxu0 %v524
    %561 = vmatpush.bf16.msra.mxu0 %v523
    %562 = vmatpush.bf16.msra.mxu0 %v522
    %563 = vmatpush.bf16.msra.mxu0 %v521
    %564 = vmatpush.bf16.msra.mxu0 %v520
    %565 = vmatmul.bf16.gmra.mxu0 %v411
    %v566 = vpop.f32.mrf.mxu0
    %v567 = vadd.f32 %v554, %v566
    %v568 = vpop.f32.mrf.mxu0
    %569 = vdwg.mxu0
    %v570 = vtanh.pop %v567
    %571 = vst [vmem:[%s7] sm:$0xff] %v570
    // Predicated region
    $region42: #{actor_forward.1} parent=1 // pred_check
      _
    $region43: #{actor_forward.1} parent=1 // pred_check_branch
      %573 = sbr.rel (0) target = $region45
    $region44: #{actor_forward.1} parent=1 // pred_region
      _
    $region45: #{actor_forward.1} parent=1 // pred_fallthru
      _
    // Predicated region
    $region46: #{actor_forward.1} parent=1 // pred_check
      _
    $region47: #{actor_forward.1} parent=1 // pred_check_branch
      %575 = sbr.rel (0) target = $region49
    $region48: #{actor_forward.1} parent=1 // pred_region
      _
    $region49: #{actor_forward.1} parent=1 // pred_fallthru
      _
    %576 = vsyncpa [#allocation3], 1
    %577 = vsyncpa [#allocation5], 1

</llo_original>
